<compile_context>
chip_gen: v6e
topology: v6e:2x2x1
jax: 0.10.0
libtpu: 0.0.40
codegen_flags: <defaults>
</compile_context>

<pallas_src>
import jax
import jax.numpy as jnp
from jax.experimental import pallas as pl
from jax.experimental.pallas import tpu as pltpu

LANES = 512              # lane-dense slab width (multiple of 128)
ROW_TILE = 512           # rows per grid step -> (512, 512) f32 tile = 1 MiB
SMALL_BYTES = 2 << 20    # per-array size below which we skip the grid


def _add2_kernel(a_ref, b_ref, c_ref):
    a = a_ref[...]
    b = b_ref[...]
    c_ref[...] = a * a + b * b


def _run_single_block(a2d, b2d):
    """Whole slab as one VMEM-resident block: no grid, no per-step overhead."""
    return pl.pallas_call(
        _add2_kernel,
        out_shape=jax.ShapeDtypeStruct(a2d.shape, a2d.dtype),
        in_specs=[pl.BlockSpec(memory_space=pltpu.MemorySpace.VMEM)] * 2,
        out_specs=pl.BlockSpec(memory_space=pltpu.MemorySpace.VMEM),
    )(a2d, b2d)


def _run_tiled(a2d, b2d):
    """Large inputs: big 1 MiB tiles, parallel grid (megacore-shardable)."""
    rows, lanes = a2d.shape
    assert rows % ROW_TILE == 0 and lanes == LANES
    spec = pl.BlockSpec((ROW_TILE, lanes), lambda i: (i, 0))
    return pl.pallas_call(
        _add2_kernel,
        out_shape=jax.ShapeDtypeStruct((rows, lanes), a2d.dtype),
        grid=(rows // ROW_TILE,),
        in_specs=[spec, spec],
        out_specs=spec,
        # Default 2-deep buffering: 3 arrays x 2 bufs x 1 MiB = 6 MiB, well
        # under the scoped-VMEM default on v5e (16 MiB) and v6e/v7x (32 MiB).
        compiler_params=pltpu.CompilerParams(
            dimension_semantics=("parallel",)
        ),
    )(a2d, b2d)


def add_model_forward(a, b):
    """Computes a**2 + b**2 with a Pallas TPU kernel for arbitrary 1-D length."""
    assert a.shape == b.shape and a.ndim == 1 and a.dtype == b.dtype
    n = a.shape[0]
    itemsize = jnp.dtype(a.dtype).itemsize
    small = (n * itemsize) <= SMALL_BYTES

    # Pad so the slab divides exactly into (sublane x lane) aligned tiles.
    tile_elems = (8 * LANES) if small else (ROW_TILE * LANES)
    n_pad = ((n + tile_elems - 1) // tile_elems) * tile_elems
    if n_pad != n:
        a = jnp.pad(a, (0, n_pad - n))
        b = jnp.pad(b, (0, n_pad - n))

    rows = n_pad // LANES
    a2d = a.reshape(rows, LANES)
    b2d = b.reshape(rows, LANES)

    c2d = _run_single_block(a2d, b2d) if small else _run_tiled(a2d, b2d)
    return c2d.reshape(n_pad)[:n]


if __name__ == "__main__":
    key = jax.random.PRNGKey(0)
    ka, kb = jax.random.split(key)

    # Small sizes consistent with the module (AddModel holds 1-D parameter
    # vectors, normal(0,1)); include the module's n=1_000_000 to exercise the
    # tiled path and odd n=1000 to exercise padding.
    ok = True
    for n in (1000, 8192, 1_000_000):
        a = jax.random.normal(ka, (n,), dtype=jnp.float32)
        b = jax.random.normal(kb, (n,), dtype=jnp.float32)

        c = add_model_forward(a, b)
        jax.block_until_ready(c)

        ref = a * a + b * b
        ok = ok and bool(jnp.allclose(c, ref, atol=1e-6, rtol=1e-6))
        ok = ok and (c.shape == (n,))

    # TODO(synk): backward (grad passthrough of the custom autograd Function)
    # is not part of the forward pass and is not implemented here.
    if ok:
        print("KERNEL_OK")
</pallas_src>

<mosaic_0001>
module attributes {stable_mosaic.version = 11 : i64} {
  func.func @_add2_kernel(%arg0: memref<8x512xf32, #tpu.memory_space<vmem>>, %arg1: memref<8x512xf32, #tpu.memory_space<vmem>>, %arg2: memref<8x512xf32, #tpu.memory_space<vmem>>) attributes {dimension_semantics = [], scalar_prefetch = 0 : i64, scratch_operands = 0 : i64, tpu.core_type = #tpu.core_type<tc>} {
    %c0 = arith.constant 0 : index
    %c0_0 = arith.constant 0 : index
    %0 = vector.load %arg0[%c0, %c0_0] : memref<8x512xf32, #tpu.memory_space<vmem>>, vector<8x512xf32>
    %c0_1 = arith.constant 0 : index
    %c0_2 = arith.constant 0 : index
    %1 = vector.load %arg1[%c0_1, %c0_2] : memref<8x512xf32, #tpu.memory_space<vmem>>, vector<8x512xf32>
    %2 = arith.mulf %0, %0 : vector<8x512xf32>
    %3 = arith.mulf %1, %1 : vector<8x512xf32>
    %4 = arith.addf %2, %3 : vector<8x512xf32>
    %c0_3 = arith.constant 0 : index
    %c0_4 = arith.constant 0 : index
    %5 = vector.load %arg2[%c0_3, %c0_4] : memref<8x512xf32, #tpu.memory_space<vmem>>, vector<8x512xf32>
    tpu.vector_store %arg2[%c0_3, %c0_4], %4 {strides = array<i32>} : memref<8x512xf32, #tpu.memory_space<vmem>>, vector<8x512xf32>,
    return
  }
}

</mosaic_0001>

<llo_original>
// kernel: tpu_custom_call.1
$region0: #{tpu_custom_call.1}
  #allocation0 [shape = 'u32[]', space=smem, size = 0x4, offset = 0x4, fixed_abs, tag = 'smem constant byte address 0x4 - core index']
  #allocation1 [shape = 'u32[144,128]{1,0:T(1,128)}', space=vmem, size = 0x12000, scoped, tag = 'internal scratch']
  %s0 = inlined_call_operand.hbm [shape: f32[8,512], index: 0, kind: input, shape index: {}]
  %s1 = inlined_call_operand.hbm [shape: f32[8,512], index: 1, kind: input, shape index: {}]
  %s2 = inlined_call_operand.hbm [shape: f32[8,512], index: 2, kind: output, shape index: {}]
  %s3 = sld [smem:[#allocation0]]
  $region26: #{tpu_custom_call.1} parent=0
    _
  %s5 = ssub.s32 1, %s3
  %s6 = scalar_select 0, %s5, %s3
  $region1: #{tpu_custom_call.1} parent=0
    #allocation2 [shape = 'u8[16384]{0}', space=vmem, size = 0x4000, scoped, tag = 'input window, operand 0, single buffered']
    #allocation3 [shape = 's32[1]{0}', space=sflag, size = 0x4, scoped, tag = 'scoped memory for tpu_custom_call.1']
    #allocation4 [shape = 's32[1]{0}', space=sflag, size = 0x4, scoped, tag = 'scoped memory for tpu_custom_call.1']
    #allocation5 [shape = 'u8[16384]{0}', space=vmem, size = 0x4000, scoped, tag = 'input window, operand 1, single buffered']
    #allocation6 [shape = 's32[1]{0}', space=sflag, size = 0x4, scoped, tag = 'scoped memory for tpu_custom_call.1']
    #allocation7 [shape = 'u8[16384]{0}', space=vmem, size = 0x4000, scoped, tag = 'output window, operand 0, single buffered']
    %7 = vsyncpa [#allocation3], 0
    %8 = vsyncpa [#allocation6], 0
    %9 = vsyncpa [#allocation4], 0
    // Predicated region
    $region2: #{tpu_custom_call.1} parent=1 // pred_check
      _
    $region3: #{tpu_custom_call.1} parent=1 // pred_check_branch
      %11 = sbr.rel (0) target = $region5
    $region4: #{tpu_custom_call.1} parent=1 // pred_region
      %s13 = ssub.s32 512, 512
      %14 = vsyncadd [#allocation3], %s13
      %s16 = sshll.u32 [#allocation2], 4
      %s17 = int_to_ptr.vmem [resolvable:$true] %s16
      %19 = dma.hbm_to_vmem [thread:$0]  %s0, 512, %s17, [#allocation3]
    $region5: #{tpu_custom_call.1} parent=1 // pred_fallthru
      _
    // Predicated region
    $region6: #{tpu_custom_call.1} parent=1 // pred_check
      _
    $region7: #{tpu_custom_call.1} parent=1 // pred_check_branch
      %21 = sbr.rel (0) target = $region9
    $region8: #{tpu_custom_call.1} parent=1 // pred_region
      %s23 = ssub.s32 512, 512
      %24 = vsyncadd [#allocation6], %s23
      %s26 = sshll.u32 [#allocation5], 4
      %s27 = int_to_ptr.vmem [resolvable:$true] %s26
      %29 = dma.hbm_to_vmem [thread:$0]  %s1, 512, %s27, [#allocation6]
    $region9: #{tpu_custom_call.1} parent=1 // pred_fallthru
      _
    // Predicated region
    $region10: #{tpu_custom_call.1} parent=1 // pred_check
      _
    $region11: #{tpu_custom_call.1} parent=1 // pred_check_branch
      %31 = sbr.rel (0) target = $region13
    $region12: #{tpu_custom_call.1} parent=1 // pred_region
      %32 = dma.done [#allocation3], 512
    $region13: #{tpu_custom_call.1} parent=1 // pred_fallthru
      _
    // Predicated region
    $region14: #{tpu_custom_call.1} parent=1 // pred_check
      _
    $region15: #{tpu_custom_call.1} parent=1 // pred_check_branch
      %34 = sbr.rel (0) target = $region17
    $region16: #{tpu_custom_call.1} parent=1 // pred_region
      %35 = dma.done [#allocation6], 512
    $region17: #{tpu_custom_call.1} parent=1 // pred_fallthru
      _
    %v36 = vld [vmem:[#allocation2] sm:$0xff]
    %v37 = vld [vmem:[#allocation2 + $0x8] sm:$0xff]
    %v38 = vld [vmem:[#allocation2 + $0x10] sm:$0xff]
    %v39 = vld [vmem:[#allocation2 + $0x18] sm:$0xff]
    %v40 = vld [vmem:[#allocation5] sm:$0xff]
    %v41 = vld [vmem:[#allocation5 + $0x8] sm:$0xff]
    %v42 = vld [vmem:[#allocation5 + $0x10] sm:$0xff]
    %v43 = vld [vmem:[#allocation5 + $0x18] sm:$0xff]
    %v44 = vmul.f32 %v36, %v36
    %v45 = vmul.f32 %v37, %v37
    %v46 = vmul.f32 %v38, %v38
    %v47 = vmul.f32 %v39, %v39
    %v48 = vmul.f32 %v40, %v40
    %v49 = vmul.f32 %v41, %v41
    %v50 = vmul.f32 %v42, %v42
    %v51 = vmul.f32 %v43, %v43
    %v52 = vadd.f32 %v44, %v48
    %v53 = vadd.f32 %v45, %v49
    %v54 = vadd.f32 %v46, %v50
    %v55 = vadd.f32 %v47, %v51
    %56 = vst [vmem:[#allocation7] sm:$0xff] %v52
    %57 = vst [vmem:[#allocation7 + $0x8] sm:$0xff] %v53
    %58 = vst [vmem:[#allocation7 + $0x10] sm:$0xff] %v54
    %59 = vst [vmem:[#allocation7 + $0x18] sm:$0xff] %v55
    // Predicated region
    $region18: #{tpu_custom_call.1} parent=1 // pred_check
      _
    $region19: #{tpu_custom_call.1} parent=1 // pred_check_branch
      %61 = sbr.rel (0) target = $region21
    $region20: #{tpu_custom_call.1} parent=1 // pred_region
      %s63 = ssub.s32 512, 512
      %64 = vsyncadd [#allocation4], %s63
      %s66 = sshll.u32 [#allocation7], 4
      %s67 = int_to_ptr.vmem [resolvable:$true] %s66
      %69 = dma.vmem_to_hbm [thread:$0]  %s67, 512, %s2, [#allocation4]
    $region21: #{tpu_custom_call.1} parent=1 // pred_fallthru
      _
    // Predicated region
    $region22: #{tpu_custom_call.1} parent=1 // pred_check
      _
    $region23: #{tpu_custom_call.1} parent=1 // pred_check_branch
      %71 = sbr.rel (0) target = $region25
    $region24: #{tpu_custom_call.1} parent=1 // pred_region
      %72 = dma.done [#allocation4], 512
    $region25: #{tpu_custom_call.1} parent=1 // pred_fallthru
      _
    %73 = vsyncpa [#allocation3], 1
    %74 = vsyncpa [#allocation6], 1
    %75 = vsyncpa [#allocation4], 1

</llo_original>
